<compile_context>
chip_gen: v5e
topology: v5e:2x2
jax: 0.10.0
libtpu: 0.0.40
codegen_flags: <defaults>
</compile_context>

<pallas_src>
import functools

import jax
import jax.numpy as jnp
from jax.experimental import pallas as pl
from jax.experimental.pallas import tpu as pltpu


def _round_up(x, m):
    return (x + m - 1) // m * m


def _vmem_estimate(tile_n, kp, dp):
    # codebook + c2 resident (constant index_map -> not double-buffered),
    # x / z_q tiles double-buffered, dist + one_hot live intermediates,
    # idx / sqerr outputs + slack.
    return (kp * dp * 4 + kp * 4
            + 2 * 2 * tile_n * dp * 4
            + 2 * tile_n * kp * 4
            + 2 * 2 * tile_n * 4 + 4096)


def _pick_tile_n(n, kp, dp, vmem_budget=48 * 1024 * 1024):
    tile_n = 128
    for cand in (1024, 512, 256, 128):
        if _vmem_estimate(cand, kp, dp) <= vmem_budget:
            tile_n = cand
            break
    # Don't grossly over-pad tiny inputs.
    return min(tile_n, max(128, _round_up(n, 128)))


def _vq_kernel(nvalid_ref, x_ref, c2_ref, cb_ref,
               zq_ref, idx_ref, sqerr_ref, *, use_bf16_dist):
    x = x_ref[...]            # (tile_n, Dp) f32
    c = cb_ref[...]           # (Kp, Dp)    f32
    c2 = c2_ref[...]          # (1, Kp)     f32 (padded codes hold a huge value)

    # distances = ||x||^2 - 2 x C^T + ||c||^2   (||c||^2 hoisted to the wrapper)
    x2 = jnp.sum(x * x, axis=-1, keepdims=True)                      # (tile_n, 1)
    if use_bf16_dist:
        dots = jax.lax.dot_general(
            x.astype(jnp.bfloat16), c.astype(jnp.bfloat16),
            (((1,), (1,)), ((), ())), preferred_element_type=jnp.float32)
    else:
        dots = jax.lax.dot_general(
            x, c, (((1,), (1,)), ((), ())), preferred_element_type=jnp.float32)
    dist = x2 - 2.0 * dots + c2                                      # (tile_n, Kp)

    # argmin (first occurrence), written with min/where so it lowers robustly
    min_d = jnp.min(dist, axis=-1, keepdims=True)                    # (tile_n, 1)
    k_iota = jax.lax.broadcasted_iota(jnp.int32, dist.shape, 1)      # (tile_n, Kp)
    big = jnp.int32(dist.shape[-1])
    idx = jnp.min(jnp.where(dist == min_d, k_iota, big), axis=-1)    # (tile_n,)
    idx = idx.astype(jnp.int32)

    # z_q = codebook[idx], as one-hot @ codebook on the MXU (exact in f32)
    one_hot = (k_iota == idx[:, None]).astype(jnp.float32)           # (tile_n, Kp)
    z_q = jnp.dot(one_hot, c, preferred_element_type=jnp.float32)    # (tile_n, Dp)

    zq_ref[...] = z_q
    idx_ref[...] = idx.reshape(1, -1)        # lane-dense (1, tile_n) store

    # masked per-tile sum((z_q - z)^2); padded rows / padded feature cols are 0
    tile_n = x.shape[0]
    row0 = pl.program_id(0) * tile_n
    rows = row0 + jax.lax.broadcasted_iota(jnp.int32, (tile_n, 1), 0)
    valid = (rows < nvalid_ref[0]).astype(jnp.float32)               # (tile_n, 1)
    diff = (z_q - x) * valid
    sqerr_ref[...] = jnp.sum(diff * diff).reshape(1, 1)


def vq_pallas(flat_x, codebook, *, tile_n=None, use_bf16_dist=False):
    N, D = flat_x.shape
    K, D2 = codebook.shape
    assert D == D2

    Dp = _round_up(max(D, 128), 128)
    Kp = _round_up(max(K, 128), 128)
    if tile_n is None:
        tile_n = _pick_tile_n(N, Kp, Dp)
    assert tile_n % 128 == 0
    Np = _round_up(max(N, tile_n), tile_n)
    grid_n = Np // tile_n

    # Pad rows / features / codes (all zero pads).
    x_p = jnp.pad(flat_x.astype(jnp.float32), ((0, Np - N), (0, Dp - D)))
    cb_p = jnp.pad(codebook.astype(jnp.float32), ((0, Kp - K), (0, Dp - D)))

    # Hoisted codebook norm; padded codes get a huge norm so they never win.
    c2 = jnp.sum(cb_p * cb_p, axis=-1)
    c2 = jnp.where(jnp.arange(Kp) < K, c2, jnp.float32(1e30))[None, :]   # (1, Kp)

    n_valid = jnp.array([N], dtype=jnp.int32)   # scalar-prefetch row count

    vmem_limit = int(min(max(2 * _vmem_estimate(tile_n, Kp, Dp),
                             32 * 1024 * 1024), 64 * 1024 * 1024))

    zq, idx, sqerr = pl.pallas_call(
        functools.partial(_vq_kernel, use_bf16_dist=use_bf16_dist),
        out_shape=(
            jax.ShapeDtypeStruct((Np, Dp), jnp.float32),
            jax.ShapeDtypeStruct((grid_n, tile_n), jnp.int32),
            jax.ShapeDtypeStruct((grid_n, 1), jnp.float32),
        ),
        grid_spec=pltpu.PrefetchScalarGridSpec(
            num_scalar_prefetch=1,
            grid=(grid_n,),
            in_specs=[
                pl.BlockSpec((tile_n, Dp), lambda i, nv: (i, 0)),
                pl.BlockSpec((1, Kp), lambda i, nv: (0, 0)),
                pl.BlockSpec((Kp, Dp), lambda i, nv: (0, 0)),
            ],
            out_specs=[
                pl.BlockSpec((tile_n, Dp), lambda i, nv: (i, 0)),
                pl.BlockSpec((1, tile_n), lambda i, nv: (i, 0)),
                pl.BlockSpec((1, 1), lambda i, nv: (i, 0)),
            ],
        ),
        compiler_params=pltpu.CompilerParams(
            dimension_semantics=("parallel",),
            vmem_limit_bytes=vmem_limit),
    )(n_valid, x_p, c2, cb_p)

    zq = zq[:N, :D]
    idx = idx.reshape(-1)[:N]
    sqerr_total = jnp.sum(sqerr)        # per-tile partials -> scalar
    return zq, idx, sqerr_total


@functools.partial(jax.jit, static_argnames=("beta", "eps", "eop_token_id",
                                              "tile_n", "use_bf16_dist"))
def vector_quantizer_forward(z, codebook, ema_cluster_size,
                             *, beta=0.25, eps=1e-5, eop_token_id=0,
                             tile_n=None, use_bf16_dist=False):
    """Inference-mode forward of VectorQuantizer (ema=True path).

    Returns (z_q_ste, vq_loss, indices, perplexity) matching the PyTorch module.
    """
    B, Q, D = z.shape
    K = codebook.shape[0]
    flat = z.reshape(-1, D)

    z_q_flat, idx_flat, sqerr = vq_pallas(flat, codebook, tile_n=tile_n,
                                          use_bf16_dist=use_bf16_dist)

    z_q = z_q_flat.reshape(B, Q, D).astype(z.dtype)
    n_elems = B * Q * D
    mse = sqerr / n_elems                 # mean((z_q - z)^2)
    codebook_loss = mse                   # F.mse_loss(z_q, z.detach())
    commitment_loss = mse                 # F.mse_loss(z, z_q.detach())
    vq_loss = codebook_loss + beta * commitment_loss
    # TODO(synk): detach semantics of codebook vs commitment loss differ under
    # autodiff; this path is the forward (inference) value only.

    # straight-through estimator
    z_q_ste = z + jax.lax.stop_gradient(z_q - z)

    # perplexity from the EMA cluster-size buffer (ema=True branch)
    counts = ema_cluster_size.astype(jnp.float32)
    if eop_token_id < K:
        counts = counts.at[eop_token_id].set(0.0)
    counts = jnp.maximum(counts, eps)
    probs = counts / (counts.sum() + eps)
    entropy = -(probs * jnp.log(probs)).sum()
    perplexity = jnp.exp(entropy)

    # TODO(synk): training-mode side effects (replacement-buffer update, EMA
    # codebook update, dead-code resetting) are stateful and not part of the
    # inference hot path; not implemented here.
    return z_q_ste, vq_loss, idx_flat.reshape(B, Q), perplexity


def _reference(z, codebook, ema_cluster_size, beta=0.25, eps=1e-5, eop=0):
    B, Q, D = z.shape
    flat = z.reshape(-1, D)
    dist = (jnp.sum(flat ** 2, 1, keepdims=True)
            - 2.0 * jnp.matmul(flat, codebook.T,
                               precision=jax.lax.Precision.HIGHEST)
            + jnp.sum(codebook ** 2, 1)[None, :])
    idx = jnp.argmin(dist, axis=1)
    z_q = codebook[idx].reshape(B, Q, D)
    mse = jnp.mean((z_q - z) ** 2)
    vq_loss = (1.0 + beta) * mse
    counts = ema_cluster_size.at[eop].set(0.0)
    counts = jnp.maximum(counts, eps)
    probs = counts / (counts.sum() + eps)
    perplexity = jnp.exp(-(probs * jnp.log(probs)).sum())
    return z_q, vq_loss, idx.reshape(B, Q), perplexity


if __name__ == "__main__":
    B, Q, D, K = 2, 8, 32, 64
    key = jax.random.PRNGKey(0)
    k_z, k_cb = jax.random.split(key)
    z = jax.random.normal(k_z, (B, Q, D), dtype=jnp.float32)
    codebook = jax.random.normal(k_cb, (K, D), dtype=jnp.float32)   # torch.randn(K, D)
    ema_cluster_size = jnp.zeros((K,), dtype=jnp.float32)           # registered buffer

    z_q_ste, vq_loss, indices, perplexity = vector_quantizer_forward(
        z, codebook, ema_cluster_size, beta=0.25, eps=1e-5, eop_token_id=0)
    jax.block_until_ready((z_q_ste, vq_loss, indices, perplexity))

    # lightweight correctness check against a pure-JAX reference
    r_zq, r_loss, r_idx, r_ppl = _reference(z, codebook, ema_cluster_size)
    assert jnp.array_equal(indices, r_idx), "index mismatch"
    assert jnp.allclose(z_q_ste, r_zq, atol=1e-5, rtol=1e-5), "z_q mismatch"
    assert jnp.allclose(vq_loss, r_loss, atol=1e-5, rtol=1e-5), "loss mismatch"
    assert jnp.allclose(perplexity, r_ppl, atol=1e-5, rtol=1e-5), "ppl mismatch"

    print("KERNEL_OK")
</pallas_src>

<mosaic_0001>
module attributes {stable_mosaic.version = 11 : i64} {
  func.func @_vq_kernel(%arg0: i32, %arg1: memref<1xi32, #tpu.memory_space<smem>>, %arg2: memref<128x128xf32, #tpu.memory_space<vmem>>, %arg3: memref<1x128xf32, #tpu.memory_space<vmem>>, %arg4: memref<128x128xf32, #tpu.memory_space<vmem>>, %arg5: memref<128x128xf32, #tpu.memory_space<vmem>>, %arg6: memref<1x128xi32, #tpu.memory_space<vmem>>, %arg7: memref<1x1xf32, #tpu.memory_space<vmem>>) attributes {dimension_semantics = [#tpu.dimension_semantics<parallel>], iteration_bounds = array<i64: 1>, scalar_prefetch = 1 : i64, scratch_operands = 0 : i64, tpu.core_type = #tpu.core_type<tc>, window_params = [{transform_indices = @transform_0, window_bounds = array<i64: 128, 128>}, {pipeline_mode = #tpu.pipeline_mode<synchronous>, transform_indices = @transform_1, window_bounds = array<i64: 1, 128>}, {pipeline_mode = #tpu.pipeline_mode<synchronous>, transform_indices = @transform_2, window_bounds = array<i64: 128, 128>}, {transform_indices = @transform_3, window_bounds = array<i64: 128, 128>}, {transform_indices = @transform_4, window_bounds = array<i64: 1, 128>}, {transform_indices = @transform_5, window_bounds = array<i64: 1, 1>}]} {
    %c0 = arith.constant 0 : index
    %c0_0 = arith.constant 0 : index
    %0 = vector.load %arg2[%c0, %c0_0] : memref<128x128xf32, #tpu.memory_space<vmem>>, vector<128x128xf32>
    %c0_1 = arith.constant 0 : index
    %c0_2 = arith.constant 0 : index
    %1 = vector.load %arg4[%c0_1, %c0_2] : memref<128x128xf32, #tpu.memory_space<vmem>>, vector<128x128xf32>
    %c0_3 = arith.constant 0 : index
    %c0_4 = arith.constant 0 : index
    %2 = vector.load %arg3[%c0_3, %c0_4] : memref<1x128xf32, #tpu.memory_space<vmem>>, vector<1x128xf32>
    %3 = arith.mulf %0, %0 : vector<128x128xf32>
    %cst = arith.constant dense<0.000000e+00> : vector<128xf32>
    %4 = vector.multi_reduction <add>, %3, %cst [1] : vector<128x128xf32> to vector<128xf32>
    %5 = vector.shape_cast %4 : vector<128xf32> to vector<128x1xf32>
    %cst_5 = arith.constant dense<0.000000e+00> : vector<128x128xf32>
    %6 = tpu.matmul %0, %1, %cst_5 {dimension_numbers = #tpu.dot_dimension_numbers<[1], [1], [0], [0], [0, 0, 1, 0], [], []>} : vector<128x128xf32>, vector<128x128xf32>, vector<128x128xf32> -> vector<128x128xf32>
    %cst_6 = arith.constant 2.000000e+00 : f32
    %7 = vector.broadcast %cst_6 : f32 to vector<128x128xf32>
    %8 = arith.mulf %7, %6 : vector<128x128xf32>
    %9 = vector.broadcast %5 : vector<128x1xf32> to vector<128x128xf32>
    %10 = arith.subf %9, %8 : vector<128x128xf32>
    %11 = vector.broadcast %2 : vector<1x128xf32> to vector<128x128xf32>
    %12 = arith.addf %10, %11 : vector<128x128xf32>
    %cst_7 = arith.constant dense<0x7F800000> : vector<128xf32>
    %13 = vector.multi_reduction <minimumf>, %12, %cst_7 [1] : vector<128x128xf32> to vector<128xf32>
    %14 = vector.shape_cast %13 : vector<128xf32> to vector<128x1xf32>
    %15 = tpu.iota {dimensions = array<i32: 1>} : vector<128x128xi32>
    %16 = vector.broadcast %14 : vector<128x1xf32> to vector<128x128xf32>
    %17 = arith.cmpf oeq, %12, %16 : vector<128x128xf32>
    %c128_i32 = arith.constant 128 : i32
    %18 = vector.broadcast %c128_i32 : i32 to vector<128x128xi32>
    %19 = arith.select %17, %15, %18 : vector<128x128xi1>, vector<128x128xi32>
    %cst_8 = arith.constant dense<2147483647> : vector<128xi32>
    %20 = vector.multi_reduction <minsi>, %19, %cst_8 [1] : vector<128x128xi32> to vector<128xi32>
    %21 = vector.shape_cast %20 : vector<128xi32> to vector<128x1xi32>
    %22 = vector.broadcast %21 : vector<128x1xi32> to vector<128x128xi32>
    %23 = arith.cmpi eq, %15, %22 : vector<128x128xi32>
    %24 = arith.extui %23 : vector<128x128xi1> to vector<128x128xi32>
    %25 = arith.sitofp %24 : vector<128x128xi32> to vector<128x128xf32>
    %cst_9 = arith.constant dense<0.000000e+00> : vector<128x128xf32>
    %26 = tpu.matmul %25, %1, %cst_9 {dimension_numbers = #tpu.dot_dimension_numbers<[1], [0], [0], [1], [0, 0, 1, 1], [], []>} : vector<128x128xf32>, vector<128x128xf32>, vector<128x128xf32> -> vector<128x128xf32>
    %c0_10 = arith.constant 0 : index
    %c0_11 = arith.constant 0 : index
    %27 = vector.load %arg5[%c0_10, %c0_11] : memref<128x128xf32, #tpu.memory_space<vmem>>, vector<128x128xf32>
    tpu.vector_store %arg5[%c0_10, %c0_11], %26 {strides = array<i32>} : memref<128x128xf32, #tpu.memory_space<vmem>>, vector<128x128xf32>,
    %28 = vector.shape_cast %20 : vector<128xi32> to vector<1x128xi32>
    %c0_12 = arith.constant 0 : index
    %c0_13 = arith.constant 0 : index
    %29 = vector.load %arg6[%c0_12, %c0_13] : memref<1x128xi32, #tpu.memory_space<vmem>>, vector<1x128xi32>
    tpu.vector_store %arg6[%c0_12, %c0_13], %28 {strides = array<i32>} : memref<1x128xi32, #tpu.memory_space<vmem>>, vector<1x128xi32>,
    %c128_i32_14 = arith.constant 128 : i32
    %30 = arith.muli %arg0, %c128_i32_14 : i32
    %31 = tpu.iota {dimensions = array<i32: 0>} : vector<128x1xi32>
    %32 = vector.broadcast %30 : i32 to vector<128x1xi32>
    %33 = arith.addi %32, %31 : vector<128x1xi32>
    %c0_15 = arith.constant 0 : index
    %34 = memref.load %arg1[%c0_15] : memref<1xi32, #tpu.memory_space<smem>>
    %35 = vector.broadcast %34 : i32 to vector<128x1xi32>
    %36 = arith.cmpi slt, %33, %35 : vector<128x1xi32>
    %37 = arith.extui %36 : vector<128x1xi1> to vector<128x1xi32>
    %38 = arith.sitofp %37 : vector<128x1xi32> to vector<128x1xf32>
    %39 = arith.subf %26, %0 : vector<128x128xf32>
    %40 = vector.broadcast %38 : vector<128x1xf32> to vector<128x128xf32>
    %41 = arith.mulf %39, %40 : vector<128x128xf32>
    %42 = arith.mulf %41, %41 : vector<128x128xf32>
    %43 = vector.shape_cast %42 : vector<128x128xf32> to vector<1x128x128xf32>
    %cst_16 = arith.constant dense<0.000000e+00> : vector<1xf32>
    %44 = vector.multi_reduction <add>, %43, %cst_16 [1, 2] : vector<1x128x128xf32> to vector<1xf32>
    %45 = vector.shape_cast %44 : vector<1xf32> to vector<1x1x1xf32>
    %46 = vector.extract %45[0, 0, 0] : f32 from vector<1x1x1xf32>
    %47 = vector.broadcast %46 : f32 to vector<1x1xf32>
    %c0_17 = arith.constant 0 : index
    %c0_18 = arith.constant 0 : index
    %48 = vector.load %arg7[%c0_17, %c0_18] : memref<1x1xf32, #tpu.memory_space<vmem>>, vector<1x1xf32>
    tpu.vector_store %arg7[%c0_17, %c0_18], %47 {strides = array<i32>} : memref<1x1xf32, #tpu.memory_space<vmem>>, vector<1x1xf32>,
    return
  }
  func.func @transform_0(%arg0: i32, %arg1: memref<1xi32, #tpu.memory_space<smem>>) -> (i32, i32) {
    %c0_i32 = arith.constant 0 : i32
    %c0_i32_0 = arith.constant 0 : i32
    return %arg0, %c0_i32 : i32, i32
  }
  func.func @transform_1(%arg0: i32, %arg1: memref<1xi32, #tpu.memory_space<smem>>) -> (i32, i32) {
    %c0_i32 = arith.constant 0 : i32
    %c0_i32_0 = arith.constant 0 : i32
    %c0_i32_1 = arith.constant 0 : i32
    return %c0_i32, %c0_i32_0 : i32, i32
  }
  func.func @transform_2(%arg0: i32, %arg1: memref<1xi32, #tpu.memory_space<smem>>) -> (i32, i32) {
    %c0_i32 = arith.constant 0 : i32
    %c0_i32_0 = arith.constant 0 : i32
    %c0_i32_1 = arith.constant 0 : i32
    return %c0_i32, %c0_i32_0 : i32, i32
  }
  func.func @transform_3(%arg0: i32, %arg1: memref<1xi32, #tpu.memory_space<smem>>) -> (i32, i32) {
    %c0_i32 = arith.constant 0 : i32
    %c0_i32_0 = arith.constant 0 : i32
    return %arg0, %c0_i32 : i32, i32
  }
  func.func @transform_4(%arg0: i32, %arg1: memref<1xi32, #tpu.memory_space<smem>>) -> (i32, i32) {
    %c0_i32 = arith.constant 0 : i32
    %c0_i32_0 = arith.constant 0 : i32
    return %arg0, %c0_i32 : i32, i32
  }
  func.func @transform_5(%arg0: i32, %arg1: memref<1xi32, #tpu.memory_space<smem>>) -> (i32, i32) {
    %c0_i32 = arith.constant 0 : i32
    %c0_i32_0 = arith.constant 0 : i32
    return %arg0, %c0_i32 : i32, i32
  }
}

</mosaic_0001>

<llo_original>
// kernel: vector_quantizer_forward.1
$region0: #{vector_quantizer_forward.1}
  #allocation0 [shape = 'u32[]', space=smem, size = 0x4, offset = 0x4, fixed_abs, tag = 'smem constant byte address 0x4 - core index']
  #allocation1 [shape = 'u32[72,128]{1,0:T(1,128)}', space=vmem, size = 0x9000, scoped, tag = 'internal scratch']
  #allocation2 [shape = 's32[1]{0}', space=sflag, size = 0x4, scoped, tag = 'scoped memory for vector_quantizer_forward.1']
  #allocation3 [shape = 's32[1]{0:T(128)S(6)}', space=smem, size = 0x200, scoped, tag = 'prefetched SMEM operand 0']
  %s0 = inlined_call_operand.<no memory space> [shape: s32[1], index: 0, kind: input, shape index: {}]
  %s1 = inlined_call_operand.vmem [shape: f32[128,128], index: 1, kind: input, shape index: {}]
  %s2 = inlined_call_operand.vmem [shape: f32[1,128], index: 2, kind: input, shape index: {}]
  %s3 = inlined_call_operand.vmem [shape: f32[128,128], index: 3, kind: input, shape index: {}]
  %s4 = inlined_call_operand.vmem [shape: f32[128,128], index: 4, kind: output, shape index: {0}]
  %s5 = inlined_call_operand.vmem [shape: s32[1,128], index: 5, kind: output, shape index: {1}]
  %s6 = inlined_call_operand.hbm [shape: f32[1,1], index: 6, kind: output, shape index: {2}]
  %7 = xla_tuple %s4, %s5, %s6
  %s8 = sld [smem:[#allocation0]]
  $region38: #{vector_quantizer_forward.1} parent=0
    _
  %s10 = ssub.s32 1, %s8
  %s11 = scalar_select 0, %s10, %s8
  %12 = sst [smem:[#allocation3]] %s0
  $region1: #{vector_quantizer_forward.1} parent=0
    #allocation4 [shape = 'u8[512]{0}', space=vmem, size = 0x400, scoped, tag = 'output window, operand 2, single buffered']
    #allocation5 [shape = 's32[1]{0}', space=sflag, size = 0x4, scoped, tag = 'scoped memory for vector_quantizer_forward.1']
    %13 = vsyncpa [#allocation5], 0
    // Predicated region
    $region2: #{vector_quantizer_forward.1} parent=1 // pred_check
      _
    $region3: #{vector_quantizer_forward.1} parent=1 // pred_check_branch
      %15 = sbr.rel (0) target = $region5
    $region4: #{vector_quantizer_forward.1} parent=1 // pred_region
      _
    $region5: #{vector_quantizer_forward.1} parent=1 // pred_fallthru
      _
    // Predicated region
    $region6: #{vector_quantizer_forward.1} parent=1 // pred_check
      _
    $region7: #{vector_quantizer_forward.1} parent=1 // pred_check_branch
      %17 = sbr.rel (0) target = $region9
    $region8: #{vector_quantizer_forward.1} parent=1 // pred_region
      _
    $region9: #{vector_quantizer_forward.1} parent=1 // pred_fallthru
      _
    // Predicated region
    $region10: #{vector_quantizer_forward.1} parent=1 // pred_check
      _
    $region11: #{vector_quantizer_forward.1} parent=1 // pred_check_branch
      %19 = sbr.rel (0) target = $region13
    $region12: #{vector_quantizer_forward.1} parent=1 // pred_region
      _
    $region13: #{vector_quantizer_forward.1} parent=1 // pred_fallthru
      _
    %v20 = vld [vmem:[%s1] sm:$0xff]
    %v21 = vld [vmem:[%s1 + $0x8] sm:$0xff]
    %v22 = vld [vmem:[%s1 + $0x10] sm:$0xff]
    %v23 = vld [vmem:[%s1 + $0x18] sm:$0xff]
    %v24 = vld [vmem:[%s1 + $0x20] sm:$0xff]
    %v25 = vld [vmem:[%s1 + $0x28] sm:$0xff]
    %v26 = vld [vmem:[%s1 + $0x30] sm:$0xff]
    %v27 = vld [vmem:[%s1 + $0x38] sm:$0xff]
    %v28 = vld [vmem:[%s1 + $0x40] sm:$0xff]
    %v29 = vld [vmem:[%s1 + $0x48] sm:$0xff]
    %v30 = vld [vmem:[%s1 + $0x50] sm:$0xff]
    %v31 = vld [vmem:[%s1 + $0x58] sm:$0xff]
    %v32 = vld [vmem:[%s1 + $0x60] sm:$0xff]
    %v33 = vld [vmem:[%s1 + $0x68] sm:$0xff]
    %v34 = vld [vmem:[%s1 + $0x70] sm:$0xff]
    %v35 = vld [vmem:[%s1 + $0x78] sm:$0xff]
    %v36 = vld [vmem:[%s3] sm:$0xff]
    %v37 = vld [vmem:[%s3 + $0x8] sm:$0xff]
    %v38 = vld [vmem:[%s3 + $0x10] sm:$0xff]
    %v39 = vld [vmem:[%s3 + $0x18] sm:$0xff]
    %v40 = vld [vmem:[%s3 + $0x20] sm:$0xff]
    %v41 = vld [vmem:[%s3 + $0x28] sm:$0xff]
    %v42 = vld [vmem:[%s3 + $0x30] sm:$0xff]
    %v43 = vld [vmem:[%s3 + $0x38] sm:$0xff]
    %v44 = vld [vmem:[%s3 + $0x40] sm:$0xff]
    %v45 = vld [vmem:[%s3 + $0x48] sm:$0xff]
    %v46 = vld [vmem:[%s3 + $0x50] sm:$0xff]
    %v47 = vld [vmem:[%s3 + $0x58] sm:$0xff]
    %v48 = vld [vmem:[%s3 + $0x60] sm:$0xff]
    %v49 = vld [vmem:[%s3 + $0x68] sm:$0xff]
    %v50 = vld [vmem:[%s3 + $0x70] sm:$0xff]
    %v51 = vld [vmem:[%s3 + $0x78] sm:$0xff]
    %v52 = vld [vmem:[%s2] sm:$0x1]
    %v53 = vmul.f32 %v20, %v20
    %v54 = vmul.f32 %v21, %v21
    %v55 = vmul.f32 %v22, %v22
    %v56 = vmul.f32 %v23, %v23
    %v57 = vmul.f32 %v24, %v24
    %v58 = vmul.f32 %v25, %v25
    %v59 = vmul.f32 %v26, %v26
    %v60 = vmul.f32 %v27, %v27
    %v61 = vmul.f32 %v28, %v28
    %v62 = vmul.f32 %v29, %v29
    %v63 = vmul.f32 %v30, %v30
    %v64 = vmul.f32 %v31, %v31
    %v65 = vmul.f32 %v32, %v32
    %v66 = vmul.f32 %v33, %v33
    %v67 = vmul.f32 %v34, %v34
    %v68 = vmul.f32 %v35, %v35
    %69 = vadd.xlane.f32.xlu0 %v53
    %v70 = vpop.xlane.xlu0 %69
    %71 = vadd.xlane.f32.xlu0 %v54
    %v72 = vpop.xlane.xlu0 %71
    %73 = vadd.xlane.f32.xlu0 %v55
    %v74 = vpop.xlane.xlu0 %73
    %75 = vadd.xlane.f32.xlu0 %v56
    %v76 = vpop.xlane.xlu0 %75
    %77 = vadd.xlane.f32.xlu0 %v57
    %v78 = vpop.xlane.xlu0 %77
    %79 = vadd.xlane.f32.xlu0 %v58
    %v80 = vpop.xlane.xlu0 %79
    %81 = vadd.xlane.f32.xlu0 %v59
    %v82 = vpop.xlane.xlu0 %81
    %83 = vadd.xlane.f32.xlu0 %v60
    %v84 = vpop.xlane.xlu0 %83
    %85 = vadd.xlane.f32.xlu0 %v61
    %v86 = vpop.xlane.xlu0 %85
    %87 = vadd.xlane.f32.xlu0 %v62
    %v88 = vpop.xlane.xlu0 %87
    %89 = vadd.xlane.f32.xlu0 %v63
    %v90 = vpop.xlane.xlu0 %89
    %91 = vadd.xlane.f32.xlu0 %v64
    %v92 = vpop.xlane.xlu0 %91
    %93 = vadd.xlane.f32.xlu0 %v65
    %v94 = vpop.xlane.xlu0 %93
    %95 = vadd.xlane.f32.xlu0 %v66
    %v96 = vpop.xlane.xlu0 %95
    %97 = vadd.xlane.f32.xlu0 %v67
    %v98 = vpop.xlane.xlu0 %97
    %99 = vadd.xlane.f32.xlu0 %v68
    %v100 = vpop.xlane.xlu0 %99
    %101 = vmatpush.xpose.msra.mxu0 %v51
    %102 = vmatpush.xpose.msra.mxu0 %v50
    %103 = vmatpush.xpose.msra.mxu0 %v49
    %104 = vmatpush.xpose.msra.mxu0 %v48
    %105 = vmatpush.xpose.msra.mxu0 %v47
    %106 = vmatpush.xpose.msra.mxu0 %v46
    %107 = vmatpush.xpose.msra.mxu0 %v45
    %108 = vmatpush.xpose.msra.mxu0 %v44
    %109 = vmatpush.xpose.msra.mxu0 %v43
    %110 = vmatpush.xpose.msra.mxu0 %v42
    %111 = vmatpush.xpose.msra.mxu0 %v41
    %112 = vmatpush.xpose.msra.mxu0 %v40
    %113 = vmatpush.xpose.msra.mxu0 %v39
    %114 = vmatpush.xpose.msra.mxu0 %v38
    %115 = vmatpush.xpose.msra.mxu0 %v37
    %116 = vmatpush.xpose.msra.mxu0 %v36
    %117 = vmatmul.f32.gmra.mxu0 %v20
    %v118 = vpop.f32.mrf.mxu0
    %v119 = vadd.f32 0.0, %v118
    %120 = vmatmul.f32.gmra.mxu0 %v21
    %v121 = vpop.f32.mrf.mxu0
    %v122 = vadd.f32 0.0, %v121
    %123 = vmatmul.f32.gmra.mxu0 %v22
    %v124 = vpop.f32.mrf.mxu0
    %v125 = vadd.f32 0.0, %v124
    %126 = vmatmul.f32.gmra.mxu0 %v23
    %v127 = vpop.f32.mrf.mxu0
    %v128 = vadd.f32 0.0, %v127
    %129 = vmatmul.f32.gmra.mxu0 %v24
    %v130 = vpop.f32.mrf.mxu0
    %v131 = vadd.f32 0.0, %v130
    %132 = vmatmul.f32.gmra.mxu0 %v25
    %v133 = vpop.f32.mrf.mxu0
    %v134 = vadd.f32 0.0, %v133
    %135 = vmatmul.f32.gmra.mxu0 %v26
    %v136 = vpop.f32.mrf.mxu0
    %v137 = vadd.f32 0.0, %v136
    %138 = vmatmul.f32.gmra.mxu0 %v27
    %v139 = vpop.f32.mrf.mxu0
    %v140 = vadd.f32 0.0, %v139
    %141 = vmatmul.f32.gmra.mxu0 %v28
    %v142 = vpop.f32.mrf.mxu0
    %v143 = vadd.f32 0.0, %v142
    %144 = vmatmul.f32.gmra.mxu0 %v29
    %v145 = vpop.f32.mrf.mxu0
    %v146 = vadd.f32 0.0, %v145
    %147 = vmatmul.f32.gmra.mxu0 %v30
    %v148 = vpop.f32.mrf.mxu0
    %v149 = vadd.f32 0.0, %v148
    %150 = vmatmul.f32.gmra.mxu0 %v31
    %v151 = vpop.f32.mrf.mxu0
    %v152 = vadd.f32 0.0, %v151
    %153 = vmatmul.f32.gmra.mxu0 %v32
    %v154 = vpop.f32.mrf.mxu0
    %v155 = vadd.f32 0.0, %v154
    %156 = vmatmul.f32.gmra.mxu0 %v33
    %v157 = vpop.f32.mrf.mxu0
    %v158 = vadd.f32 0.0, %v157
    %159 = vmatmul.f32.gmra.mxu0 %v34
    %v160 = vpop.f32.mrf.mxu0
    %v161 = vadd.f32 0.0, %v160
    %162 = vmatmul.f32.gmra.mxu0 %v35
    %v163 = vpop.f32.mrf.mxu0
    %v164 = vadd.f32 0.0, %v163
    %165 = vdwg.mxu0
    %v166 = vmul.f32 %v119, 2.0
    %v167 = vmul.f32 %v122, 2.0
    %v168 = vmul.f32 %v125, 2.0
    %v169 = vmul.f32 %v128, 2.0
    %v170 = vmul.f32 %v131, 2.0
    %v171 = vmul.f32 %v134, 2.0
    %v172 = vmul.f32 %v137, 2.0
    %v173 = vmul.f32 %v140, 2.0
    %v174 = vmul.f32 %v143, 2.0
    %v175 = vmul.f32 %v146, 2.0
    %v176 = vmul.f32 %v149, 2.0
    %v177 = vmul.f32 %v152, 2.0
    %v178 = vmul.f32 %v155, 2.0
    %v179 = vmul.f32 %v158, 2.0
    %v180 = vmul.f32 %v161, 2.0
    %v181 = vmul.f32 %v164, 2.0
    %v182 = vsub.f32 %v70, %v166
    %v183 = vsub.f32 %v72, %v167
    %v184 = vsub.f32 %v74, %v168
    %v185 = vsub.f32 %v76, %v169
    %v186 = vsub.f32 %v78, %v170
    %v187 = vsub.f32 %v80, %v171
    %v188 = vsub.f32 %v82, %v172
    %v189 = vsub.f32 %v84, %v173
    %v190 = vsub.f32 %v86, %v174
    %v191 = vsub.f32 %v88, %v175
    %v192 = vsub.f32 %v90, %v176
    %v193 = vsub.f32 %v92, %v177
    %v194 = vsub.f32 %v94, %v178
    %v195 = vsub.f32 %v96, %v179
    %v196 = vsub.f32 %v98, %v180
    %v197 = vsub.f32 %v100, %v181
    %v199 = vperm.slane %v52, 0
    %v201 = vadd.f32 %v182, %v199
    %v202 = vadd.f32 %v183, %v199
    %v203 = vadd.f32 %v184, %v199
    %v204 = vadd.f32 %v185, %v199
    %v205 = vadd.f32 %v186, %v199
    %v206 = vadd.f32 %v187, %v199
    %v207 = vadd.f32 %v188, %v199
    %v208 = vadd.f32 %v189, %v199
    %v209 = vadd.f32 %v190, %v199
    %v210 = vadd.f32 %v191, %v199
    %v211 = vadd.f32 %v192, %v199
    %v212 = vadd.f32 %v193, %v199
    %v213 = vadd.f32 %v194, %v199
    %v214 = vadd.f32 %v195, %v199
    %v215 = vadd.f32 %v196, %v199
    %v216 = vadd.f32 %v197, %v199
    %217 = vmin.xlane.f32.xlu0 %v201
    %v218 = vpop.xlane.xlu0 %217
    %219 = vmin.xlane.f32.xlu0 %v202
    %v220 = vpop.xlane.xlu0 %219
    %221 = vmin.xlane.f32.xlu0 %v203
    %v222 = vpop.xlane.xlu0 %221
    %223 = vmin.xlane.f32.xlu0 %v204
    %v224 = vpop.xlane.xlu0 %223
    %225 = vmin.xlane.f32.xlu0 %v205
    %v226 = vpop.xlane.xlu0 %225
    %227 = vmin.xlane.f32.xlu0 %v206
    %v228 = vpop.xlane.xlu0 %227
    %229 = vmin.xlane.f32.xlu0 %v207
    %v230 = vpop.xlane.xlu0 %229
    %231 = vmin.xlane.f32.xlu0 %v208
    %v232 = vpop.xlane.xlu0 %231
    %233 = vmin.xlane.f32.xlu0 %v209
    %v234 = vpop.xlane.xlu0 %233
    %235 = vmin.xlane.f32.xlu0 %v210
    %v236 = vpop.xlane.xlu0 %235
    %237 = vmin.xlane.f32.xlu0 %v211
    %v238 = vpop.xlane.xlu0 %237
    %239 = vmin.xlane.f32.xlu0 %v212
    %v240 = vpop.xlane.xlu0 %239
    %241 = vmin.xlane.f32.xlu0 %v213
    %v242 = vpop.xlane.xlu0 %241
    %243 = vmin.xlane.f32.xlu0 %v214
    %v244 = vpop.xlane.xlu0 %243
    %245 = vmin.xlane.f32.xlu0 %v215
    %v246 = vpop.xlane.xlu0 %245
    %247 = vmin.xlane.f32.xlu0 %v216
    %v248 = vpop.xlane.xlu0 %247
    %v249 = vlaneseq
    %v250 = vand.u32 %v249, 127
    %vm251 = vcmp.eq.f32.partialorder %v201, %v218
    %vm252 = vcmp.eq.f32.partialorder %v202, %v220
    %vm253 = vcmp.eq.f32.partialorder %v203, %v222
    %vm254 = vcmp.eq.f32.partialorder %v204, %v224
    %vm255 = vcmp.eq.f32.partialorder %v205, %v226
    %vm256 = vcmp.eq.f32.partialorder %v206, %v228
    %vm257 = vcmp.eq.f32.partialorder %v207, %v230
    %vm258 = vcmp.eq.f32.partialorder %v208, %v232
    %vm259 = vcmp.eq.f32.partialorder %v209, %v234
    %vm260 = vcmp.eq.f32.partialorder %v210, %v236
    %vm261 = vcmp.eq.f32.partialorder %v211, %v238
    %vm262 = vcmp.eq.f32.partialorder %v212, %v240
    %vm263 = vcmp.eq.f32.partialorder %v213, %v242
    %vm264 = vcmp.eq.f32.partialorder %v214, %v244
    %vm265 = vcmp.eq.f32.partialorder %v215, %v246
    %vm266 = vcmp.eq.f32.partialorder %v216, %v248
    %v267 = vsel %vm251, %v250, 128
    %v268 = vsel %vm252, %v250, 128
    %v269 = vsel %vm253, %v250, 128
    %v270 = vsel %vm254, %v250, 128
    %v271 = vsel %vm255, %v250, 128
    %v272 = vsel %vm256, %v250, 128
    %v273 = vsel %vm257, %v250, 128
    %v274 = vsel %vm258, %v250, 128
    %v275 = vsel %vm259, %v250, 128
    %v276 = vsel %vm260, %v250, 128
    %v277 = vsel %vm261, %v250, 128
    %v278 = vsel %vm262, %v250, 128
    %v279 = vsel %vm263, %v250, 128
    %v280 = vsel %vm264, %v250, 128
    %v281 = vsel %vm265, %v250, 128
    %v282 = vsel %vm266, %v250, 128
    %v283 = vand.u32 %v267, 65535
    %v284 = vshra.s32 %v267, 16
    %v285 = vcvt.s32.f32 %v283
    %v286 = vcvt.s32.f32 %v284
    %287 = vmin.xlane.f32.xlu0 %v286
    %v288 = vpop.xlane.xlu0 %287
    %vm289 = vcmp.eq.f32.partialorder %v286, %v288
    %v290 = vsel %vm289, %v285, inf
    %291 = vmin.xlane.f32.xlu0 %v290
    %v292 = vpop.xlane.xlu0 %291
    %v293 = vcvt.f32.s32 %v292
    %v294 = vcvt.f32.s32 %v288
    %v295 = vshll.u32 %v294, 16
    %v296 = vadd.s32 %v295, %v293
    %v297 = vand.u32 %v268, 65535
    %v298 = vshra.s32 %v268, 16
    %v299 = vcvt.s32.f32 %v297
    %v300 = vcvt.s32.f32 %v298
    %301 = vmin.xlane.f32.xlu0 %v300
    %v302 = vpop.xlane.xlu0 %301
    %vm303 = vcmp.eq.f32.partialorder %v300, %v302
    %v304 = vsel %vm303, %v299, inf
    %305 = vmin.xlane.f32.xlu0 %v304
    %v306 = vpop.xlane.xlu0 %305
    %v307 = vcvt.f32.s32 %v306
    %v308 = vcvt.f32.s32 %v302
    %v309 = vshll.u32 %v308, 16
    %v310 = vadd.s32 %v309, %v307
    %v311 = vand.u32 %v269, 65535
    %v312 = vshra.s32 %v269, 16
    %v313 = vcvt.s32.f32 %v311
    %v314 = vcvt.s32.f32 %v312
    %315 = vmin.xlane.f32.xlu0 %v314
    %v316 = vpop.xlane.xlu0 %315
    %vm317 = vcmp.eq.f32.partialorder %v314, %v316
    %v318 = vsel %vm317, %v313, inf
    %319 = vmin.xlane.f32.xlu0 %v318
    %v320 = vpop.xlane.xlu0 %319
    %v321 = vcvt.f32.s32 %v320
    %v322 = vcvt.f32.s32 %v316
    %v323 = vshll.u32 %v322, 16
    %v324 = vadd.s32 %v323, %v321
    %v325 = vand.u32 %v270, 65535
    %v326 = vshra.s32 %v270, 16
    %v327 = vcvt.s32.f32 %v325
    %v328 = vcvt.s32.f32 %v326
    %329 = vmin.xlane.f32.xlu0 %v328
    %v330 = vpop.xlane.xlu0 %329
    %vm331 = vcmp.eq.f32.partialorder %v328, %v330
    %v332 = vsel %vm331, %v327, inf
    %333 = vmin.xlane.f32.xlu0 %v332
    %v334 = vpop.xlane.xlu0 %333
    %v335 = vcvt.f32.s32 %v334
    %v336 = vcvt.f32.s32 %v330
    %v337 = vshll.u32 %v336, 16
    %v338 = vadd.s32 %v337, %v335
    %v339 = vand.u32 %v271, 65535
    %v340 = vshra.s32 %v271, 16
    %v341 = vcvt.s32.f32 %v339
    %v342 = vcvt.s32.f32 %v340
    %343 = vmin.xlane.f32.xlu0 %v342
    %v344 = vpop.xlane.xlu0 %343
    %vm345 = vcmp.eq.f32.partialorder %v342, %v344
    %v346 = vsel %vm345, %v341, inf
    %347 = vmin.xlane.f32.xlu0 %v346
    %v348 = vpop.xlane.xlu0 %347
    %v349 = vcvt.f32.s32 %v348
    %v350 = vcvt.f32.s32 %v344
    %v351 = vshll.u32 %v350, 16
    %v352 = vadd.s32 %v351, %v349
    %v353 = vand.u32 %v272, 65535
    %v354 = vshra.s32 %v272, 16
    %v355 = vcvt.s32.f32 %v353
    %v356 = vcvt.s32.f32 %v354
    %357 = vmin.xlane.f32.xlu0 %v356
    %v358 = vpop.xlane.xlu0 %357
    %vm359 = vcmp.eq.f32.partialorder %v356, %v358
    %v360 = vsel %vm359, %v355, inf
    %361 = vmin.xlane.f32.xlu0 %v360
    %v362 = vpop.xlane.xlu0 %361
    %v363 = vcvt.f32.s32 %v362
    %v364 = vcvt.f32.s32 %v358
    %v365 = vshll.u32 %v364, 16
    %v366 = vadd.s32 %v365, %v363
    %v367 = vand.u32 %v273, 65535
    %v368 = vshra.s32 %v273, 16
    %v369 = vcvt.s32.f32 %v367
    %v370 = vcvt.s32.f32 %v368
    %371 = vmin.xlane.f32.xlu0 %v370
    %v372 = vpop.xlane.xlu0 %371
    %vm373 = vcmp.eq.f32.partialorder %v370, %v372
    %v374 = vsel %vm373, %v369, inf
    %375 = vmin.xlane.f32.xlu0 %v374
    %v376 = vpop.xlane.xlu0 %375
    %v377 = vcvt.f32.s32 %v376
    %v378 = vcvt.f32.s32 %v372
    %v379 = vshll.u32 %v378, 16
    %v380 = vadd.s32 %v379, %v377
    %v381 = vand.u32 %v274, 65535
    %v382 = vshra.s32 %v274, 16
    %v383 = vcvt.s32.f32 %v381
    %v384 = vcvt.s32.f32 %v382
    %385 = vmin.xlane.f32.xlu0 %v384
    %v386 = vpop.xlane.xlu0 %385
    %vm387 = vcmp.eq.f32.partialorder %v384, %v386
    %v388 = vsel %vm387, %v383, inf
    %389 = vmin.xlane.f32.xlu0 %v388
    %v390 = vpop.xlane.xlu0 %389
    %v391 = vcvt.f32.s32 %v390
    %v392 = vcvt.f32.s32 %v386
    %v393 = vshll.u32 %v392, 16
    %v394 = vadd.s32 %v393, %v391
    %v395 = vand.u32 %v275, 65535
    %v396 = vshra.s32 %v275, 16
    %v397 = vcvt.s32.f32 %v395
    %v398 = vcvt.s32.f32 %v396
    %399 = vmin.xlane.f32.xlu0 %v398
    %v400 = vpop.xlane.xlu0 %399
    %vm401 = vcmp.eq.f32.partialorder %v398, %v400
    %v402 = vsel %vm401, %v397, inf
    %403 = vmin.xlane.f32.xlu0 %v402
    %v404 = vpop.xlane.xlu0 %403
    %v405 = vcvt.f32.s32 %v404
    %v406 = vcvt.f32.s32 %v400
    %v407 = vshll.u32 %v406, 16
    %v408 = vadd.s32 %v407, %v405
    %v409 = vand.u32 %v276, 65535
    %v410 = vshra.s32 %v276, 16
    %v411 = vcvt.s32.f32 %v409
    %v412 = vcvt.s32.f32 %v410
    %413 = vmin.xlane.f32.xlu0 %v412
    %v414 = vpop.xlane.xlu0 %413
    %vm415 = vcmp.eq.f32.partialorder %v412, %v414
    %v416 = vsel %vm415, %v411, inf
    %417 = vmin.xlane.f32.xlu0 %v416
    %v418 = vpop.xlane.xlu0 %417
    %v419 = vcvt.f32.s32 %v418
    %v420 = vcvt.f32.s32 %v414
    %v421 = vshll.u32 %v420, 16
    %v422 = vadd.s32 %v421, %v419
    %v423 = vand.u32 %v277, 65535
    %v424 = vshra.s32 %v277, 16
    %v425 = vcvt.s32.f32 %v423
    %v426 = vcvt.s32.f32 %v424
    %427 = vmin.xlane.f32.xlu0 %v426
    %v428 = vpop.xlane.xlu0 %427
    %vm429 = vcmp.eq.f32.partialorder %v426, %v428
    %v430 = vsel %vm429, %v425, inf
    %431 = vmin.xlane.f32.xlu0 %v430
    %v432 = vpop.xlane.xlu0 %431
    %v433 = vcvt.f32.s32 %v432
    %v434 = vcvt.f32.s32 %v428
    %v435 = vshll.u32 %v434, 16
    %v436 = vadd.s32 %v435, %v433
    %v437 = vand.u32 %v278, 65535
    %v438 = vshra.s32 %v278, 16
    %v439 = vcvt.s32.f32 %v437
    %v440 = vcvt.s32.f32 %v438
    %441 = vmin.xlane.f32.xlu0 %v440
    %v442 = vpop.xlane.xlu0 %441
    %vm443 = vcmp.eq.f32.partialorder %v440, %v442
    %v444 = vsel %vm443, %v439, inf
    %445 = vmin.xlane.f32.xlu0 %v444
    %v446 = vpop.xlane.xlu0 %445
    %v447 = vcvt.f32.s32 %v446
    %v448 = vcvt.f32.s32 %v442
    %v449 = vshll.u32 %v448, 16
    %v450 = vadd.s32 %v449, %v447
    %v451 = vand.u32 %v279, 65535
    %v452 = vshra.s32 %v279, 16
    %v453 = vcvt.s32.f32 %v451
    %v454 = vcvt.s32.f32 %v452
    %455 = vmin.xlane.f32.xlu0 %v454
    %v456 = vpop.xlane.xlu0 %455
    %vm457 = vcmp.eq.f32.partialorder %v454, %v456
    %v458 = vsel %vm457, %v453, inf
    %459 = vmin.xlane.f32.xlu0 %v458
    %v460 = vpop.xlane.xlu0 %459
    %v461 = vcvt.f32.s32 %v460
    %v462 = vcvt.f32.s32 %v456
    %v463 = vshll.u32 %v462, 16
    %v464 = vadd.s32 %v463, %v461
    %v465 = vand.u32 %v280, 65535
    %v466 = vshra.s32 %v280, 16
    %v467 = vcvt.s32.f32 %v465
    %v468 = vcvt.s32.f32 %v466
    %469 = vmin.xlane.f32.xlu0 %v468
    %v470 = vpop.xlane.xlu0 %469
    %vm471 = vcmp.eq.f32.partialorder %v468, %v470
    %v472 = vsel %vm471, %v467, inf
    %473 = vmin.xlane.f32.xlu0 %v472
    %v474 = vpop.xlane.xlu0 %473
    %v475 = vcvt.f32.s32 %v474
    %v476 = vcvt.f32.s32 %v470
    %v477 = vshll.u32 %v476, 16
    %v478 = vadd.s32 %v477, %v475
    %v479 = vand.u32 %v281, 65535
    %v480 = vshra.s32 %v281, 16
    %v481 = vcvt.s32.f32 %v479
    %v482 = vcvt.s32.f32 %v480
    %483 = vmin.xlane.f32.xlu0 %v482
    %v484 = vpop.xlane.xlu0 %483
    %vm485 = vcmp.eq.f32.partialorder %v482, %v484
    %v486 = vsel %vm485, %v481, inf
    %487 = vmin.xlane.f32.xlu0 %v486
    %v488 = vpop.xlane.xlu0 %487
    %v489 = vcvt.f32.s32 %v488
    %v490 = vcvt.f32.s32 %v484
    %v491 = vshll.u32 %v490, 16
    %v492 = vadd.s32 %v491, %v489
    %v493 = vand.u32 %v282, 65535
    %v494 = vshra.s32 %v282, 16
    %v495 = vcvt.s32.f32 %v493
    %v496 = vcvt.s32.f32 %v494
    %497 = vmin.xlane.f32.xlu0 %v496
    %v498 = vpop.xlane.xlu0 %497
    %vm499 = vcmp.eq.f32.partialorder %v496, %v498
    %v500 = vsel %vm499, %v495, inf
    %501 = vmin.xlane.f32.xlu0 %v500
    %v502 = vpop.xlane.xlu0 %501
    %v503 = vcvt.f32.s32 %v502
    %v504 = vcvt.f32.s32 %v498
    %v505 = vshll.u32 %v504, 16
    %v506 = vadd.s32 %v505, %v503
    %vm507 = vcmp.eq.s32.totalorder %v250, %v296
    %vm508 = vcmp.eq.s32.totalorder %v250, %v310
    %vm509 = vcmp.eq.s32.totalorder %v250, %v324
    %vm510 = vcmp.eq.s32.totalorder %v250, %v338
    %vm511 = vcmp.eq.s32.totalorder %v250, %v352
    %vm512 = vcmp.eq.s32.totalorder %v250, %v366
    %vm513 = vcmp.eq.s32.totalorder %v250, %v380
    %vm514 = vcmp.eq.s32.totalorder %v250, %v394
    %vm515 = vcmp.eq.s32.totalorder %v250, %v408
    %vm516 = vcmp.eq.s32.totalorder %v250, %v422
    %vm517 = vcmp.eq.s32.totalorder %v250, %v436
    %vm518 = vcmp.eq.s32.totalorder %v250, %v450
    %vm519 = vcmp.eq.s32.totalorder %v250, %v464
    %vm520 = vcmp.eq.s32.totalorder %v250, %v478
    %vm521 = vcmp.eq.s32.totalorder %v250, %v492
    %vm522 = vcmp.eq.s32.totalorder %v250, %v506
    %v523 = vsel %vm507, 1, 0
    %v524 = vsel %vm508, 1, 0
    %v525 = vsel %vm509, 1, 0
    %v526 = vsel %vm510, 1, 0
    %v527 = vsel %vm511, 1, 0
    %v528 = vsel %vm512, 1, 0
    %v529 = vsel %vm513, 1, 0
    %v530 = vsel %vm514, 1, 0
    %v531 = vsel %vm515, 1, 0
    %v532 = vsel %vm516, 1, 0
    %v533 = vsel %vm517, 1, 0
    %v534 = vsel %vm518, 1, 0
    %v535 = vsel %vm519, 1, 0
    %v536 = vsel %vm520, 1, 0
    %v537 = vsel %vm521, 1, 0
    %v538 = vsel %vm522, 1, 0
    %v539 = vcvt.s32.f32 %v523
    %v540 = vcvt.s32.f32 %v524
    %v541 = vcvt.s32.f32 %v525
    %v542 = vcvt.s32.f32 %v526
    %v543 = vcvt.s32.f32 %v527
    %v544 = vcvt.s32.f32 %v528
    %v545 = vcvt.s32.f32 %v529
    %v546 = vcvt.s32.f32 %v530
    %v547 = vcvt.s32.f32 %v531
    %v548 = vcvt.s32.f32 %v532
    %v549 = vcvt.s32.f32 %v533
    %v550 = vcvt.s32.f32 %v534
    %v551 = vcvt.s32.f32 %v535
    %v552 = vcvt.s32.f32 %v536
    %v553 = vcvt.s32.f32 %v537
    %v554 = vcvt.s32.f32 %v538
    %555 = vmatpush.msra.mxu0 %v51
    %556 = vmatpush.msra.mxu0 %v50
    %557 = vmatpush.msra.mxu0 %v49
    %558 = vmatpush.msra.mxu0 %v48
    %559 = vmatpush.msra.mxu0 %v47
    %560 = vmatpush.msra.mxu0 %v46
    %561 = vmatpush.msra.mxu0 %v45
    %562 = vmatpush.msra.mxu0 %v44
    %563 = vmatpush.msra.mxu0 %v43
    %564 = vmatpush.msra.mxu0 %v42
    %565 = vmatpush.msra.mxu0 %v41
    %566 = vmatpush.msra.mxu0 %v40
    %567 = vmatpush.msra.mxu0 %v39
    %568 = vmatpush.msra.mxu0 %v38
    %569 = vmatpush.msra.mxu0 %v37
    %570 = vmatpush.msra.mxu0 %v36
    %571 = vmatmul.f32.gmra.mxu0 %v539
    %v572 = vpop.f32.mrf.mxu0
    %v573 = vadd.f32 0.0, %v572
    %574 = vmatmul.f32.gmra.mxu0 %v540
    %v575 = vpop.f32.mrf.mxu0
    %v576 = vadd.f32 0.0, %v575
    %577 = vmatmul.f32.gmra.mxu0 %v541
    %v578 = vpop.f32.mrf.mxu0
    %v579 = vadd.f32 0.0, %v578
    %580 = vmatmul.f32.gmra.mxu0 %v542
    %v581 = vpop.f32.mrf.mxu0
    %v582 = vadd.f32 0.0, %v581
    %583 = vmatmul.f32.gmra.mxu0 %v543
    %v584 = vpop.f32.mrf.mxu0
    %v585 = vadd.f32 0.0, %v584
    %586 = vmatmul.f32.gmra.mxu0 %v544
    %v587 = vpop.f32.mrf.mxu0
    %v588 = vadd.f32 0.0, %v587
    %589 = vmatmul.f32.gmra.mxu0 %v545
    %v590 = vpop.f32.mrf.mxu0
    %v591 = vadd.f32 0.0, %v590
    %592 = vmatmul.f32.gmra.mxu0 %v546
    %v593 = vpop.f32.mrf.mxu0
    %v594 = vadd.f32 0.0, %v593
    %595 = vmatmul.f32.gmra.mxu0 %v547
    %v596 = vpop.f32.mrf.mxu0
    %v597 = vadd.f32 0.0, %v596
    %598 = vmatmul.f32.gmra.mxu0 %v548
    %v599 = vpop.f32.mrf.mxu0
    %v600 = vadd.f32 0.0, %v599
    %601 = vmatmul.f32.gmra.mxu0 %v549
    %v602 = vpop.f32.mrf.mxu0
    %v603 = vadd.f32 0.0, %v602
    %604 = vmatmul.f32.gmra.mxu0 %v550
    %v605 = vpop.f32.mrf.mxu0
    %v606 = vadd.f32 0.0, %v605
    %607 = vmatmul.f32.gmra.mxu0 %v551
    %v608 = vpop.f32.mrf.mxu0
    %v609 = vadd.f32 0.0, %v608
    %610 = vmatmul.f32.gmra.mxu0 %v552
    %v611 = vpop.f32.mrf.mxu0
    %v612 = vadd.f32 0.0, %v611
    %613 = vmatmul.f32.gmra.mxu0 %v553
    %v614 = vpop.f32.mrf.mxu0
    %v615 = vadd.f32 0.0, %v614
    %616 = vmatmul.f32.gmra.mxu0 %v554
    %v617 = vpop.f32.mrf.mxu0
    %v618 = vadd.f32 0.0, %v617
    %619 = vdwg.mxu0
    %620 = vst [vmem:[%s4] sm:$0xff] %v573
    %621 = vst [vmem:[%s4 + $0x8] sm:$0xff] %v576
    %622 = vst [vmem:[%s4 + $0x10] sm:$0xff] %v579
    %623 = vst [vmem:[%s4 + $0x18] sm:$0xff] %v582
    %624 = vst [vmem:[%s4 + $0x20] sm:$0xff] %v585
    %625 = vst [vmem:[%s4 + $0x28] sm:$0xff] %v588
    %626 = vst [vmem:[%s4 + $0x30] sm:$0xff] %v591
    %627 = vst [vmem:[%s4 + $0x38] sm:$0xff] %v594
    %628 = vst [vmem:[%s4 + $0x40] sm:$0xff] %v597
    %629 = vst [vmem:[%s4 + $0x48] sm:$0xff] %v600
    %630 = vst [vmem:[%s4 + $0x50] sm:$0xff] %v603
    %631 = vst [vmem:[%s4 + $0x58] sm:$0xff] %v606
    %632 = vst [vmem:[%s4 + $0x60] sm:$0xff] %v609
    %633 = vst [vmem:[%s4 + $0x68] sm:$0xff] %v612
    %634 = vst [vmem:[%s4 + $0x70] sm:$0xff] %v615
    %635 = vst [vmem:[%s4 + $0x78] sm:$0xff] %v618
    %v636 = vperm.slane %v296, %v250
    %v637 = vadd.s32 %v250, 4294967288
    %v638 = vperm.slane %v310, %v637
    %vm639 = vcmask 130112
    %v640 = vsel %vm639, %v638, %v636
    %v641 = vadd.s32 %v250, 4294967280
    %v642 = vperm.slane %v324, %v641
    %vm643 = vcmask 195712
    %v644 = vsel %vm643, %v642, %v640
    %v645 = vadd.s32 %v250, 4294967272
    %v646 = vperm.slane %v338, %v645
    %vm647 = vcmask 261312
    %v648 = vsel %vm647, %v646, %v644
    %v649 = vadd.s32 %v250, 4294967264
    %v650 = vperm.slane %v352, %v649
    %vm651 = vcmask 326912
    %v652 = vsel %vm651, %v650, %v648
    %v653 = vadd.s32 %v250, 4294967256
    %v654 = vperm.slane %v366, %v653
    %vm655 = vcmask 392512
    %v656 = vsel %vm655, %v654, %v652
    %v657 = vadd.s32 %v250, 4294967248
    %v658 = vperm.slane %v380, %v657
    %vm659 = vcmask 458112
    %v660 = vsel %vm659, %v658, %v656
    %v661 = vadd.s32 %v250, 4294967240
    %v662 = vperm.slane %v394, %v661
    %vm663 = vcmask 523712
    %v664 = vsel %vm663, %v662, %v660
    %v665 = vadd.s32 %v250, 4294967232
    %v666 = vperm.slane %v408, %v665
    %vm667 = vcmask 589312
    %v668 = vsel %vm667, %v666, %v664
    %v669 = vadd.s32 %v250, 4294967224
    %v670 = vperm.slane %v422, %v669
    %vm671 = vcmask 654912
    %v672 = vsel %vm671, %v670, %v668
    %v673 = vadd.s32 %v250, 4294967216
    %v674 = vperm.slane %v436, %v673
    %vm675 = vcmask 720512
    %v676 = vsel %vm675, %v674, %v672
    %v677 = vadd.s32 %v250, 4294967208
    %v678 = vperm.slane %v450, %v677
    %vm679 = vcmask 786112
    %v680 = vsel %vm679, %v678, %v676
    %v681 = vadd.s32 %v250, 4294967200
    %v682 = vperm.slane %v464, %v681
    %vm683 = vcmask 851712
    %v684 = vsel %vm683, %v682, %v680
    %v685 = vadd.s32 %v250, 4294967192
    %v686 = vperm.slane %v478, %v685
    %vm687 = vcmask 917312
    %v688 = vsel %vm687, %v686, %v684
    %v689 = vadd.s32 %v250, 4294967184
    %v690 = vperm.slane %v492, %v689
    %vm691 = vcmask 982912
    %v692 = vsel %vm691, %v690, %v688
    %v693 = vadd.s32 %v250, 4294967176
    %v694 = vperm.slane %v506, %v693
    %vm695 = vcmask 1048512
    %v696 = vsel %vm695, %v694, %v692
    %697 = vst [vmem:[%s5] sm:$0x1] %v696
    %s698 = smul.u32 0, 128
    %v699 = vlaneseq
    %v700 = vshrl.u32 %v699, 7
    %v701 = vadd.s32 %v700, 8
    %v702 = vadd.s32 %v700, 16
    %v703 = vadd.s32 %v700, 24
    %v704 = vadd.s32 %v700, 32
    %v705 = vadd.s32 %v700, 40
    %v706 = vadd.s32 %v700, 48
    %v707 = vadd.s32 %v700, 56
    %v708 = vadd.s32 %v700, 64
    %v709 = vadd.s32 %v700, 72
    %v710 = vadd.s32 %v700, 80
    %v711 = vadd.s32 %v700, 88
    %v712 = vadd.s32 %v700, 96
    %v713 = vadd.s32 %v700, 104
    %v714 = vadd.s32 %v700, 112
    %v715 = vadd.s32 %v700, 120
    %v716 = vstv %s698
    %v717 = vadd.s32 %v716, %v700
    %v718 = vadd.s32 %v716, %v701
    %v719 = vadd.s32 %v716, %v702
    %v720 = vadd.s32 %v716, %v703
    %v721 = vadd.s32 %v716, %v704
    %v722 = vadd.s32 %v716, %v705
    %v723 = vadd.s32 %v716, %v706
    %v724 = vadd.s32 %v716, %v707
    %v725 = vadd.s32 %v716, %v708
    %v726 = vadd.s32 %v716, %v709
    %v727 = vadd.s32 %v716, %v710
    %v728 = vadd.s32 %v716, %v711
    %v729 = vadd.s32 %v716, %v712
    %v730 = vadd.s32 %v716, %v713
    %v731 = vadd.s32 %v716, %v714
    %v732 = vadd.s32 %v716, %v715
    %s733 = sld [smem:[#allocation3]]
    %v734 = vstv %s733
    %vm735 = vcmp.lt.s32.totalorder %v717, %v734
    %vm736 = vcmp.lt.s32.totalorder %v718, %v734
    %vm737 = vcmp.lt.s32.totalorder %v719, %v734
    %vm738 = vcmp.lt.s32.totalorder %v720, %v734
    %vm739 = vcmp.lt.s32.totalorder %v721, %v734
    %vm740 = vcmp.lt.s32.totalorder %v722, %v734
    %vm741 = vcmp.lt.s32.totalorder %v723, %v734
    %vm742 = vcmp.lt.s32.totalorder %v724, %v734
    %vm743 = vcmp.lt.s32.totalorder %v725, %v734
    %vm744 = vcmp.lt.s32.totalorder %v726, %v734
    %vm745 = vcmp.lt.s32.totalorder %v727, %v734
    %vm746 = vcmp.lt.s32.totalorder %v728, %v734
    %vm747 = vcmp.lt.s32.totalorder %v729, %v734
    %vm748 = vcmp.lt.s32.totalorder %v730, %v734
    %vm749 = vcmp.lt.s32.totalorder %v731, %v734
    %vm750 = vcmp.lt.s32.totalorder %v732, %v734
    %v751 = vsel %vm735, 1, 0
    %v752 = vsel %vm736, 1, 0
    %v753 = vsel %vm737, 1, 0
    %v754 = vsel %vm738, 1, 0
    %v755 = vsel %vm739, 1, 0
    %v756 = vsel %vm740, 1, 0
    %v757 = vsel %vm741, 1, 0
    %v758 = vsel %vm742, 1, 0
    %v759 = vsel %vm743, 1, 0
    %v760 = vsel %vm744, 1, 0
    %v761 = vsel %vm745, 1, 0
    %v762 = vsel %vm746, 1, 0
    %v763 = vsel %vm747, 1, 0
    %v764 = vsel %vm748, 1, 0
    %v765 = vsel %vm749, 1, 0
    %v766 = vsel %vm750, 1, 0
    %v767 = vcvt.s32.f32 %v751
    %v768 = vcvt.s32.f32 %v752
    %v769 = vcvt.s32.f32 %v753
    %v770 = vcvt.s32.f32 %v754
    %v771 = vcvt.s32.f32 %v755
    %v772 = vcvt.s32.f32 %v756
    %v773 = vcvt.s32.f32 %v757
    %v774 = vcvt.s32.f32 %v758
    %v775 = vcvt.s32.f32 %v759
    %v776 = vcvt.s32.f32 %v760
    %v777 = vcvt.s32.f32 %v761
    %v778 = vcvt.s32.f32 %v762
    %v779 = vcvt.s32.f32 %v763
    %v780 = vcvt.s32.f32 %v764
    %v781 = vcvt.s32.f32 %v765
    %v782 = vcvt.s32.f32 %v766
    %v783 = vsub.f32 %v573, %v20
    %v784 = vsub.f32 %v576, %v21
    %v785 = vsub.f32 %v579, %v22
    %v786 = vsub.f32 %v582, %v23
    %v787 = vsub.f32 %v585, %v24
    %v788 = vsub.f32 %v588, %v25
    %v789 = vsub.f32 %v591, %v26
    %v790 = vsub.f32 %v594, %v27
    %v791 = vsub.f32 %v597, %v28
    %v792 = vsub.f32 %v600, %v29
    %v793 = vsub.f32 %v603, %v30
    %v794 = vsub.f32 %v606, %v31
    %v795 = vsub.f32 %v609, %v32
    %v796 = vsub.f32 %v612, %v33
    %v797 = vsub.f32 %v615, %v34
    %v798 = vsub.f32 %v618, %v35
    %v799 = vmul.f32 %v783, %v767
    %v800 = vmul.f32 %v784, %v768
    %v801 = vmul.f32 %v785, %v769
    %v802 = vmul.f32 %v786, %v770
    %v803 = vmul.f32 %v787, %v771
    %v804 = vmul.f32 %v788, %v772
    %v805 = vmul.f32 %v789, %v773
    %v806 = vmul.f32 %v790, %v774
    %v807 = vmul.f32 %v791, %v775
    %v808 = vmul.f32 %v792, %v776
    %v809 = vmul.f32 %v793, %v777
    %v810 = vmul.f32 %v794, %v778
    %v811 = vmul.f32 %v795, %v779
    %v812 = vmul.f32 %v796, %v780
    %v813 = vmul.f32 %v797, %v781
    %v814 = vmul.f32 %v798, %v782
    %v815 = vmul.f32 %v799, %v799
    %v816 = vmul.f32 %v800, %v800
    %v817 = vmul.f32 %v801, %v801
    %v818 = vmul.f32 %v802, %v802
    %v819 = vmul.f32 %v803, %v803
    %v820 = vmul.f32 %v804, %v804
    %v821 = vmul.f32 %v805, %v805
    %v822 = vmul.f32 %v806, %v806
    %v823 = vmul.f32 %v807, %v807
    %v824 = vmul.f32 %v808, %v808
    %v825 = vmul.f32 %v809, %v809
    %v826 = vmul.f32 %v810, %v810
    %v827 = vmul.f32 %v811, %v811
    %v828 = vmul.f32 %v812, %v812
    %v829 = vmul.f32 %v813, %v813
    %v830 = vmul.f32 %v814, %v814
    %v831 = vadd.f32 %v815, %v816
    %v832 = vadd.f32 %v831, %v817
    %v833 = vadd.f32 %v832, %v818
    %v834 = vadd.f32 %v833, %v819
    %v835 = vadd.f32 %v834, %v820
    %v836 = vadd.f32 %v835, %v821
    %v837 = vadd.f32 %v836, %v822
    %v838 = vadd.f32 %v837, %v823
    %v839 = vadd.f32 %v838, %v824
    %v840 = vadd.f32 %v839, %v825
    %v841 = vadd.f32 %v840, %v826
    %v842 = vadd.f32 %v841, %v827
    %v843 = vadd.f32 %v842, %v828
    %v844 = vadd.f32 %v843, %v829
    %v845 = vadd.f32 %v844, %v830
    %846 = vadd.xlane.f32.xlu0 %v845
    %v847 = vpop.xlane.xlu0 %846
    %v848 = vrot.slane %v847, 4
    %v849 = vadd.f32 %v847, %v848
    %v850 = vrot.slane %v849, 2
    %v851 = vadd.f32 %v849, %v850
    %v852 = vrot.slane %v851, 1
    %v853 = vadd.f32 %v851, %v852
    %s854 = vtos %v853
    %v855 = vstv %s854
    %vm856 = vcmask 0
    %857 = vst.msk [vmem:[#allocation4] sm:$0x1] %vm856, %v855
    // Predicated region
    $region14: #{vector_quantizer_forward.1} parent=1 // pred_check
      _
    $region15: #{vector_quantizer_forward.1} parent=1 // pred_check_branch
      %859 = sbr.rel (0) target = $region17
    $region16: #{vector_quantizer_forward.1} parent=1 // pred_region
      _
    $region17: #{vector_quantizer_forward.1} parent=1 // pred_fallthru
      _
    // Predicated region
    $region18: #{vector_quantizer_forward.1} parent=1 // pred_check
      _
    $region19: #{vector_quantizer_forward.1} parent=1 // pred_check_branch
      %861 = sbr.rel (0) target = $region21
    $region20: #{vector_quantizer_forward.1} parent=1 // pred_region
      _
    $region21: #{vector_quantizer_forward.1} parent=1 // pred_fallthru
      _
    // Predicated region
    $region22: #{vector_quantizer_forward.1} parent=1 // pred_check
      _
    $region23: #{vector_quantizer_forward.1} parent=1 // pred_check_branch
      %863 = sbr.rel (0) target = $region25
    $region24: #{vector_quantizer_forward.1} parent=1 // pred_region
      %865 = vsyncadd [#allocation5], 0
      %s867 = sshll.u32 [#allocation4], 4
      %s868 = int_to_ptr.vmem [resolvable:$true] %s867
      %s869 = sshll.u32 %s6, 4
      %s870 = int_to_ptr.hbm [resolvable:$true] %s869
      %872 = dma.vmem_to_hbm [thread:$0]  %s868, 16, %s870, [#allocation5]
    $region25: #{vector_quantizer_forward.1} parent=1 // pred_fallthru
      _
    // Predicated region
    $region26: #{vector_quantizer_forward.1} parent=1 // pred_check
      _
    $region27: #{vector_quantizer_forward.1} parent=1 // pred_check_branch
      %874 = sbr.rel (0) target = $region29
    $region28: #{vector_quantizer_forward.1} parent=1 // pred_region
      _
    $region29: #{vector_quantizer_forward.1} parent=1 // pred_fallthru
      _
    // Predicated region
    $region30: #{vector_quantizer_forward.1} parent=1 // pred_check
      _
    $region31: #{vector_quantizer_forward.1} parent=1 // pred_check_branch
      %876 = sbr.rel (0) target = $region33
    $region32: #{vector_quantizer_forward.1} parent=1 // pred_region
      _
    $region33: #{vector_quantizer_forward.1} parent=1 // pred_fallthru
      _
    // Predicated region
    $region34: #{vector_quantizer_forward.1} parent=1 // pred_check
      _
    $region35: #{vector_quantizer_forward.1} parent=1 // pred_check_branch
      %878 = sbr.rel (0) target = $region37
    $region36: #{vector_quantizer_forward.1} parent=1 // pred_region
      %880 = dma.done [#allocation5], 16
    $region37: #{vector_quantizer_forward.1} parent=1 // pred_fallthru
      _
    %881 = vsyncpa [#allocation5], 1

</llo_original>
